<compile_context>
chip_gen: v7x
topology: tpu7x:2x2x1
jax: 0.10.0
libtpu: 0.0.40
codegen_flags: <defaults>
</compile_context>

<pallas_src>
import functools

import jax
import jax.numpy as jnp
from jax.experimental import pallas as pl
from jax.experimental.pallas import tpu as pltpu


def _round_up(v, m):
    return ((v + m - 1) // m) * m


def _vmem_capacity_bytes():
    try:
        return int(pltpu.get_tpu_info().vmem_capacity_bytes)
    except Exception:
        return 64 * 1024 * 1024  # conservative: v7x per-TensorCore VMEM


def _log_softmax_lane_padded(z, num_classes):
    """Max-stabilized log_softmax over the first `num_classes` lanes of z (f32)."""
    if num_classes != z.shape[-1]:
        col = jax.lax.broadcasted_iota(jnp.int32, z.shape, 1)
        z = jnp.where(col < num_classes, z, -1e30)
    m = jnp.max(z, axis=-1, keepdims=True)
    s = z - m
    return s - jnp.log(jnp.sum(jnp.exp(s), axis=-1, keepdims=True))


# ----------------------------- kernels -------------------------------------


def gcn_pass1_kernel(a_ref, drow_ref, xs_ref, w1_ref, b1_ref, w2_ref, g_ref):
    """Row tile i:  g = dinv_i * relu(dinv_i * (A_i @ xs) @ W1 + b1) @ W2pad  (bf16)."""
    a = a_ref[...].astype(jnp.bfloat16)                         # int8 tile -> bf16 (exact)
    agg = jnp.dot(a, xs_ref[...], preferred_element_type=jnp.float32)        # (tn, F)
    h = jnp.dot(drow_ref[...] * agg, w1_ref[...],
                preferred_element_type=jnp.float32) + b1_ref[...]            # (tn, E)
    h = jnp.maximum(h, 0.0)
    g = drow_ref[...] * jnp.dot(h, w2_ref[...], preferred_element_type=jnp.float32)
    g_ref[...] = g.astype(g_ref.dtype)                          # lane-dense (tn, c_pad) store


def gcn_pass2_kernel(a_ref, drow_ref, g_ref, b2_ref, o_ref, *, num_classes):
    """Row tile i:  out = log_softmax(dinv_i * (A_i @ g) + b2)."""
    a = a_ref[...].astype(jnp.bfloat16)
    z = drow_ref[...] * jnp.dot(a, g_ref[...],
                                preferred_element_type=jnp.float32) + b2_ref[...]
    o_ref[...] = _log_softmax_lane_padded(z, num_classes)


def gcn_fused_kernel(a_ref, dinv_ref, xs_ref, w1_ref, b1_ref, w2_ref, b2_ref, o_ref,
                     *, num_classes):
    """Small-N path: whole A resident, conv1 -> ReLU -> conv2 -> log_softmax."""
    a = a_ref[...].astype(jnp.bfloat16)
    dinv = dinv_ref[...]
    agg = jnp.dot(a, xs_ref[...], preferred_element_type=jnp.float32)
    h = jnp.maximum(jnp.dot(dinv * agg, w1_ref[...],
                            preferred_element_type=jnp.float32) + b1_ref[...], 0.0)
    g = (dinv * jnp.dot(h, w2_ref[...], preferred_element_type=jnp.float32)
         ).astype(jnp.bfloat16)
    z = dinv * jnp.dot(a, g, preferred_element_type=jnp.float32) + b2_ref[...]
    o_ref[...] = _log_softmax_lane_padded(z, num_classes)


# ----------------------------- wrapper --------------------------------------


def _pick_row_tile(n, f, e, c_pad, vmem_limit_bytes):
    n_pad = _round_up(n, 32)
    f_pad = _round_up(f, 128)
    e_pad = _round_up(e, 128)
    # Single-buffered residents (Buffered(1)): xs in pass 1 / g in pass 2 (take the
    # larger), plus a generous allowance for weights and biases.
    resident = max(n_pad * f_pad * 2, n_pad * c_pad * 2) + (256 << 10)
    # Streamed bytes per A row:
    #   int8 A double buffer (2 B) + in-kernel bf16 upcast copy (2 B)      -> 4*n
    #   drow (.,1) f32 block, lane-padded to 128, double buffered          -> 1 KiB
    #   output tile (f32 worst case), double buffered                      -> 8*c_pad
    #   f32 temporaries (agg, h, softmax intermediates) + slack
    per_row = (4 * n + 2 * 128 * 4 + 2 * c_pad * 4
               + 4 * (f_pad + e_pad + 2 * c_pad) + 2048)
    avail = vmem_limit_bytes - resident
    tn = max(32, avail // per_row)
    tn = min(tn, 1024, n_pad)
    tn = max(32, (tn // 32) * 32)          # int8/bf16 sublane packing
    if tn >= 256:
        tn = (tn // 128) * 128             # keep 256-wide MXU row passes full
    if n > 32 and pl.cdiv(n, tn) < 2:      # >=2 grid steps so "parallel" spans both TCs (v7x)
        tn = max(32, ((tn // 2) // 32) * 32)
    return tn


def geometric_gcn(x, a_int8, deg, w1, b1, w2, b2, force_tiled=False):
    n, f = x.shape
    e = w1.shape[1]
    c = w2.shape[1]
    c_pad = _round_up(c, 128)              # lane-dense g / output stores

    # ---- plain-JAX glue, hoisted out of the kernels ----
    dinv = jax.lax.rsqrt(deg.astype(jnp.float32)).reshape(n, 1)   # D^{-1/2}, deg >= 1
    xs = (dinv * x).astype(jnp.bfloat16)                          # column-side scaling, once
    w1f = w1.astype(jnp.float32)
    b1r = b1.reshape(1, e).astype(jnp.float32)
    w2p = jnp.zeros((e, c_pad), jnp.float32).at[:, :c].set(w2)    # zero-padded class columns
    b2p = jnp.zeros((1, c_pad), jnp.float32).at[:, :c].set(b2.reshape(1, c))

    vmem_cap = _vmem_capacity_bytes()
    vmem_limit = min(int(vmem_cap * 0.8), vmem_cap - (8 << 20))

    # ---- small-N fused path: A resident, one kernel, A read from HBM once ----
    fused_bytes = 3 * n * n + 8192 * n + (1 << 20)
    if (not force_tiled) and fused_bytes <= vmem_limit // 2:
        out_pad = pl.pallas_call(
            functools.partial(gcn_fused_kernel, num_classes=c),
            out_shape=jax.ShapeDtypeStruct((n, c_pad), jnp.float32),
            compiler_params=pltpu.CompilerParams(vmem_limit_bytes=vmem_limit),
        )(a_int8, dinv, xs, w1f, b1r, w2p, b2p)
        return out_pad[:, :c]

    # ---- large-N path: two row-tiled passes over the int8 A stream ----
    tn = _pick_row_tile(n, f, e, c_pad, vmem_limit)
    grid = (pl.cdiv(n, tn),)
    cparams = pltpu.CompilerParams(
        dimension_semantics=("parallel",),   # row tiles shard across TCs (v7x megacore)
        vmem_limit_bytes=vmem_limit,
    )

    def resident_spec(shape):
        return pl.BlockSpec(shape, lambda i: (0,) * len(shape),
                            pipeline_mode=pl.Buffered(1))

    # pass 1: g = D^{-1/2} relu(conv1(x)) @ W2pad  (aggregate at width F, bf16 output)
    g = pl.pallas_call(
        gcn_pass1_kernel,
        out_shape=jax.ShapeDtypeStruct((n, c_pad), jnp.bfloat16),
        grid=grid,
        in_specs=[
            pl.BlockSpec((tn, n), lambda i: (i, 0)),   # int8 A row tile (streamed)
            pl.BlockSpec((tn, 1), lambda i: (i, 0)),   # dinv rows of this tile
            resident_spec((n, f)),                     # xs = dinv * x (bf16, resident)
            resident_spec((f, e)),                     # W1
            resident_spec((1, e)),                     # b1
            resident_spec((e, c_pad)),                 # W2 (zero-padded classes)
        ],
        out_specs=pl.BlockSpec((tn, c_pad), lambda i: (i, 0)),
        compiler_params=cparams,
    )(a_int8, dinv, xs, w1f, b1r, w2p)

    # pass 2: aggregate at class width + bias + masked log_softmax
    out_pad = pl.pallas_call(
        functools.partial(gcn_pass2_kernel, num_classes=c),
        out_shape=jax.ShapeDtypeStruct((n, c_pad), jnp.float32),
        grid=grid,
        in_specs=[
            pl.BlockSpec((tn, n), lambda i: (i, 0)),   # int8 A row tile (streamed)
            pl.BlockSpec((tn, 1), lambda i: (i, 0)),   # dinv rows of this tile
            resident_spec((n, c_pad)),                 # g (bf16, resident)
            resident_spec((1, c_pad)),                 # b2 (zero-padded)
        ],
        out_specs=pl.BlockSpec((tn, c_pad), lambda i: (i, 0)),
        compiler_params=cparams,
    )(a_int8, dinv, g, b2p)
    return out_pad[:, :c]


# ----------------------------- graph / reference ----------------------------


def build_graph(edge_index, num_nodes):
    """Dense A[t, s] in int8 (scatter-add: duplicates accumulate, like PyG) plus
    self loops, and deg[t] = row sum of A+I computed from the edge list."""
    src, dst = edge_index[0], edge_index[1]
    a = jnp.zeros((num_nodes, num_nodes), jnp.int8)
    a = a.at[dst, src].add(jnp.ones(src.shape, jnp.int8))
    diag = jnp.arange(num_nodes)
    a = a.at[diag, diag].add(jnp.ones((num_nodes,), jnp.int8))
    deg = (jnp.bincount(dst, length=num_nodes) + 1).astype(jnp.float32)
    return a, deg


def reference_jax(x, a_f32, deg, w1, b1, w2, b2, quantize_like_kernel=False):
    mm = functools.partial(jnp.dot, precision=jax.lax.Precision.HIGHEST)
    dinv = jax.lax.rsqrt(deg.astype(jnp.float32)).reshape(-1, 1)
    q = ((lambda v: v.astype(jnp.bfloat16).astype(jnp.float32))
         if quantize_like_kernel else (lambda v: v))
    xs = q(dinv * x)
    h = jnp.maximum(mm(dinv * mm(a_f32, xs), w1) + b1, 0.0)
    g = q(dinv * mm(h, w2))
    z = dinv * mm(a_f32, g) + b2
    return jax.nn.log_softmax(z, axis=1)


if __name__ == "__main__":
    N, FEAT, EMBED, NUM_CLASSES, NUM_EDGES = 64, 16, 32, 8, 128

    key = jax.random.PRNGKey(0)
    k_x, k_src, k_off, k_w1, k_b1, k_w2, k_b2 = jax.random.split(key, 7)

    x = jax.random.normal(k_x, (N, FEAT), dtype=jnp.float32)

    # undirected random edges without self loops (symmetrized)
    src = jax.random.randint(k_src, (NUM_EDGES,), 0, N)
    off = jax.random.randint(k_off, (NUM_EDGES,), 1, N)
    dst = (src + off) % N
    edge_index = jnp.stack(
        [jnp.concatenate([src, dst]), jnp.concatenate([dst, src])], axis=0)

    a_i8, deg = build_graph(edge_index, N)

    w1 = jax.random.normal(k_w1, (FEAT, EMBED), jnp.float32) * (1.0 / jnp.sqrt(FEAT))
    b1 = jax.random.normal(k_b1, (EMBED,), jnp.float32) * 0.1
    w2 = jax.random.normal(k_w2, (EMBED, NUM_CLASSES), jnp.float32) * (1.0 / jnp.sqrt(EMBED))
    b2 = jax.random.normal(k_b2, (NUM_CLASSES,), jnp.float32) * 0.1

    run_fused = jax.jit(functools.partial(geometric_gcn, force_tiled=False))
    run_tiled = jax.jit(functools.partial(geometric_gcn, force_tiled=True))

    out = jax.block_until_ready(run_fused(x, a_i8, deg, w1, b1, w2, b2))
    out_tiled = jax.block_until_ready(run_tiled(x, a_i8, deg, w1, b1, w2, b2))

    a_f32 = a_i8.astype(jnp.float32)
    ref_q = reference_jax(x, a_f32, deg, w1, b1, w2, b2, quantize_like_kernel=True)
    ref = reference_jax(x, a_f32, deg, w1, b1, w2, b2)

    assert out.shape == (N, NUM_CLASSES)
    assert out_tiled.shape == (N, NUM_CLASSES)
    # tight check vs a reference applying the same bf16 rounding of xs / g
    assert jnp.allclose(out, ref_q, atol=1e-3, rtol=1e-3)
    assert jnp.allclose(out_tiled, ref_q, atol=1e-3, rtol=1e-3)
    # loose sanity check vs the full-f32 reference (bf16 feature rounding ~0.4% rel)
    assert jnp.allclose(out, ref, atol=1e-1, rtol=1e-1)

    print("KERNEL_OK")
</pallas_src>

<mosaic_0001>
module attributes {stable_mosaic.version = 11 : i64} {
  func.func @gcn_fused_kernel(%arg0: memref<64x64xi8, #tpu.memory_space<vmem>>, %arg1: memref<64x1xf32, #tpu.memory_space<vmem>>, %arg2: memref<64x16xbf16, #tpu.memory_space<vmem>>, %arg3: memref<16x32xf32, #tpu.memory_space<vmem>>, %arg4: memref<1x32xf32, #tpu.memory_space<vmem>>, %arg5: memref<32x128xf32, #tpu.memory_space<vmem>>, %arg6: memref<1x128xf32, #tpu.memory_space<vmem>>, %arg7: memref<64x128xf32, #tpu.memory_space<vmem>>) attributes {dimension_semantics = [], scalar_prefetch = 0 : i64, scratch_operands = 0 : i64, tpu.core_type = #tpu.core_type<tc>} {
    %c0 = arith.constant 0 : index
    %c0_0 = arith.constant 0 : index
    %0 = vector.load %arg0[%c0, %c0_0] : memref<64x64xi8, #tpu.memory_space<vmem>>, vector<64x64xi8>
    %1 = arith.sitofp %0 : vector<64x64xi8> to vector<64x64xbf16>
    %c0_1 = arith.constant 0 : index
    %c0_2 = arith.constant 0 : index
    %2 = vector.load %arg1[%c0_1, %c0_2] : memref<64x1xf32, #tpu.memory_space<vmem>>, vector<64x1xf32>
    %c0_3 = arith.constant 0 : index
    %c0_4 = arith.constant 0 : index
    %3 = vector.load %arg2[%c0_3, %c0_4] : memref<64x16xbf16, #tpu.memory_space<vmem>>, vector<64x16xbf16>
    %cst = arith.constant dense<0.000000e+00> : vector<64x16xf32>
    %4 = tpu.matmul %1, %3, %cst {dimension_numbers = #tpu.dot_dimension_numbers<[1], [0], [0], [1], [0, 0, 1, 1], [], []>} : vector<64x64xbf16>, vector<64x16xbf16>, vector<64x16xf32> -> vector<64x16xf32>
    %5 = vector.broadcast %2 : vector<64x1xf32> to vector<64x16xf32>
    %6 = arith.mulf %5, %4 : vector<64x16xf32>
    %c0_5 = arith.constant 0 : index
    %c0_6 = arith.constant 0 : index
    %7 = vector.load %arg3[%c0_5, %c0_6] : memref<16x32xf32, #tpu.memory_space<vmem>>, vector<16x32xf32>
    %cst_7 = arith.constant dense<0.000000e+00> : vector<64x32xf32>
    %8 = tpu.matmul %6, %7, %cst_7 {dimension_numbers = #tpu.dot_dimension_numbers<[1], [0], [0], [1], [0, 0, 1, 1], [], []>} : vector<64x16xf32>, vector<16x32xf32>, vector<64x32xf32> -> vector<64x32xf32>
    %c0_8 = arith.constant 0 : index
    %c0_9 = arith.constant 0 : index
    %9 = vector.load %arg4[%c0_8, %c0_9] : memref<1x32xf32, #tpu.memory_space<vmem>>, vector<1x32xf32>
    %10 = vector.broadcast %9 : vector<1x32xf32> to vector<64x32xf32>
    %11 = arith.addf %8, %10 : vector<64x32xf32>
    %cst_10 = arith.constant 0.000000e+00 : f32
    %12 = vector.broadcast %cst_10 : f32 to vector<64x32xf32>
    %13 = arith.maximumf %11, %12 : vector<64x32xf32>
    %c0_11 = arith.constant 0 : index
    %c0_12 = arith.constant 0 : index
    %14 = vector.load %arg5[%c0_11, %c0_12] : memref<32x128xf32, #tpu.memory_space<vmem>>, vector<32x128xf32>
    %cst_13 = arith.constant dense<0.000000e+00> : vector<64x128xf32>
    %15 = tpu.matmul %13, %14, %cst_13 {dimension_numbers = #tpu.dot_dimension_numbers<[1], [0], [0], [1], [0, 0, 1, 1], [], []>} : vector<64x32xf32>, vector<32x128xf32>, vector<64x128xf32> -> vector<64x128xf32>
    %16 = vector.broadcast %2 : vector<64x1xf32> to vector<64x128xf32>
    %17 = arith.mulf %16, %15 : vector<64x128xf32>
    %18 = arith.truncf %17 : vector<64x128xf32> to vector<64x128xbf16>
    %cst_14 = arith.constant dense<0.000000e+00> : vector<64x128xf32>
    %19 = tpu.matmul %1, %18, %cst_14 {dimension_numbers = #tpu.dot_dimension_numbers<[1], [0], [0], [1], [0, 0, 1, 1], [], []>} : vector<64x64xbf16>, vector<64x128xbf16>, vector<64x128xf32> -> vector<64x128xf32>
    %20 = vector.broadcast %2 : vector<64x1xf32> to vector<64x128xf32>
    %21 = arith.mulf %20, %19 : vector<64x128xf32>
    %c0_15 = arith.constant 0 : index
    %c0_16 = arith.constant 0 : index
    %22 = vector.load %arg6[%c0_15, %c0_16] : memref<1x128xf32, #tpu.memory_space<vmem>>, vector<1x128xf32>
    %23 = vector.broadcast %22 : vector<1x128xf32> to vector<64x128xf32>
    %24 = arith.addf %21, %23 : vector<64x128xf32>
    %25 = tpu.iota {dimensions = array<i32: 1>} : vector<64x128xi32>
    %c8_i32 = arith.constant 8 : i32
    %26 = vector.broadcast %c8_i32 : i32 to vector<64x128xi32>
    %27 = arith.cmpi slt, %25, %26 : vector<64x128xi32>
    %cst_17 = arith.constant -1.000000e+30 : f32
    %28 = vector.broadcast %cst_17 : f32 to vector<64x128xf32>
    %29 = arith.select %27, %24, %28 : vector<64x128xi1>, vector<64x128xf32>
    %cst_18 = arith.constant dense<0xFF800000> : vector<64xf32>
    %30 = vector.multi_reduction <maximumf>, %29, %cst_18 [1] : vector<64x128xf32> to vector<64xf32>
    %31 = vector.shape_cast %30 : vector<64xf32> to vector<64x1xf32>
    %32 = vector.broadcast %31 : vector<64x1xf32> to vector<64x128xf32>
    %33 = arith.subf %29, %32 : vector<64x128xf32>
    %34 = math.exp %33 : vector<64x128xf32>
    %cst_19 = arith.constant dense<0.000000e+00> : vector<64xf32>
    %35 = vector.multi_reduction <add>, %34, %cst_19 [1] : vector<64x128xf32> to vector<64xf32>
    %36 = vector.shape_cast %35 : vector<64xf32> to vector<64x1xf32>
    %37 = math.log %36 : vector<64x1xf32>
    %38 = vector.broadcast %37 : vector<64x1xf32> to vector<64x128xf32>
    %39 = arith.subf %33, %38 : vector<64x128xf32>
    %c0_20 = arith.constant 0 : index
    %c0_21 = arith.constant 0 : index
    %40 = vector.load %arg7[%c0_20, %c0_21] : memref<64x128xf32, #tpu.memory_space<vmem>>, vector<64x128xf32>
    tpu.vector_store %arg7[%c0_20, %c0_21], %39 {strides = array<i32>} : memref<64x128xf32, #tpu.memory_space<vmem>>, vector<64x128xf32>,
    return
  }
}

</mosaic_0001>

<llo_original>
// kernel: geometric_gcn.1
$region0: #{geometric_gcn.1}
  #allocation0 [shape = 'u32[]', space=smem, size = 0x4, offset = 0x4, fixed_abs, tag = 'smem constant byte address 0x4 - core index']
  #allocation1 [shape = 'u32[144,128]{1,0:T(1,128)}', space=vmem, size = 0x12000, scoped, tag = 'internal scratch']
  %s0 = inlined_call_operand.vmem [shape: s8[64,64], index: 0, kind: input, shape index: {}]
  %s1 = inlined_call_operand.vmem [shape: f32[64,1], index: 1, kind: input, shape index: {}]
  %s2 = inlined_call_operand.vmem [shape: bf16[64,16], index: 2, kind: input, shape index: {}]
  %s3 = inlined_call_operand.vmem [shape: f32[16,32], index: 3, kind: input, shape index: {}]
  %s4 = inlined_call_operand.vmem [shape: f32[1,32], index: 4, kind: input, shape index: {}]
  %s5 = inlined_call_operand.vmem [shape: f32[32,128], index: 5, kind: input, shape index: {}]
  %s6 = inlined_call_operand.vmem [shape: f32[1,128], index: 6, kind: input, shape index: {}]
  %s7 = inlined_call_operand.vmem [shape: f32[64,128], index: 7, kind: output, shape index: {}]
  %s8 = sld [smem:[#allocation0]]
  $region38: #{geometric_gcn.1} parent=0
    _
  %s10 = ssub.s32 1, %s8
  %s11 = scalar_select 0, %s10, %s8
  // Predicated region
  $region2: #{geometric_gcn.1} parent=0 // pred_check
    _
  $region3: #{geometric_gcn.1} parent=0 // pred_check_branch
    %13 = sbr.rel (0) target = $region5
  $region4: #{geometric_gcn.1} parent=0 // pred_region
    _
  $region5: #{geometric_gcn.1} parent=0 // pred_fallthru
    _
  // Predicated region
  $region6: #{geometric_gcn.1} parent=0 // pred_check
    _
  $region7: #{geometric_gcn.1} parent=0 // pred_check_branch
    %15 = sbr.rel (0) target = $region9
  $region8: #{geometric_gcn.1} parent=0 // pred_region
    _
  $region9: #{geometric_gcn.1} parent=0 // pred_fallthru
    _
  // Predicated region
  $region10: #{geometric_gcn.1} parent=0 // pred_check
    _
  $region11: #{geometric_gcn.1} parent=0 // pred_check_branch
    %17 = sbr.rel (0) target = $region13
  $region12: #{geometric_gcn.1} parent=0 // pred_region
    _
  $region13: #{geometric_gcn.1} parent=0 // pred_fallthru
    _
  // Predicated region
  $region14: #{geometric_gcn.1} parent=0 // pred_check
    _
  $region15: #{geometric_gcn.1} parent=0 // pred_check_branch
    %19 = sbr.rel (0) target = $region17
  $region16: #{geometric_gcn.1} parent=0 // pred_region
    _
  $region17: #{geometric_gcn.1} parent=0 // pred_fallthru
    _
  // Predicated region
  $region18: #{geometric_gcn.1} parent=0 // pred_check
    _
  $region19: #{geometric_gcn.1} parent=0 // pred_check_branch
    %21 = sbr.rel (0) target = $region21
  $region20: #{geometric_gcn.1} parent=0 // pred_region
    _
  $region21: #{geometric_gcn.1} parent=0 // pred_fallthru
    _
  // Predicated region
  $region22: #{geometric_gcn.1} parent=0 // pred_check
    _
  $region23: #{geometric_gcn.1} parent=0 // pred_check_branch
    %23 = sbr.rel (0) target = $region25
  $region24: #{geometric_gcn.1} parent=0 // pred_region
    _
  $region25: #{geometric_gcn.1} parent=0 // pred_fallthru
    _
  // Predicated region
  $region26: #{geometric_gcn.1} parent=0 // pred_check
    _
  $region27: #{geometric_gcn.1} parent=0 // pred_check_branch
    %25 = sbr.rel (0) target = $region29
  $region28: #{geometric_gcn.1} parent=0 // pred_region
    _
  $region29: #{geometric_gcn.1} parent=0 // pred_fallthru
    _
  %v27 = vld [vmem:[%s0] sm:$0xff]
  %v28 = vld [vmem:[%s0 + $0x8] sm:$0xff]
  %v29 = vunpack.c.l.s8.bf16 %v27
  %v30 = vunpack.c.h.s8.bf16 %v27
  %v31 = vunpack.c.l.s8.bf16 %v28
  %v32 = vunpack.c.h.s8.bf16 %v28
  %v33 = vld [vmem:[%s1] sm:$0xff]
  %v34 = vld [vmem:[%s1 + $0x8] sm:$0xff]
  %v35 = vld [vmem:[%s1 + $0x10] sm:$0xff]
  %v36 = vld [vmem:[%s1 + $0x18] sm:$0xff]
  %v37 = vld [vmem:[%s1 + $0x20] sm:$0xff]
  %v38 = vld [vmem:[%s1 + $0x28] sm:$0xff]
  %v39 = vld [vmem:[%s1 + $0x30] sm:$0xff]
  %v40 = vld [vmem:[%s1 + $0x38] sm:$0xff]
  %v41 = vld [vmem:[%s2] sm:$0xf]
  %v42 = vld [vmem:[%s2 + $0x4] sm:$0xf]
  %v43 = vld [vmem:[%s2 + $0x8] sm:$0xf]
  %v44 = vld [vmem:[%s2 + $0xc] sm:$0xf]
  %v45 = vld [vmem:[%s2 + $0x10] sm:$0xf]
  %v46 = vld [vmem:[%s2 + $0x14] sm:$0xf]
  %v47 = vld [vmem:[%s2 + $0x18] sm:$0xf]
  %v48 = vld [vmem:[%s2 + $0x1c] sm:$0xf]
  %v57 = vunpack.c.l.b16 %v41
  %v58 = vunpack.c.l.b16 %v42
  %v59 = vunpack.c.l.b16 %v43
  %v60 = vunpack.c.l.b16 %v44
  %v61 = vunpack.c.l.b16 %v45
  %v62 = vunpack.c.l.b16 %v46
  %v63 = vunpack.c.l.b16 %v47
  %v64 = vunpack.c.l.b16 %v48
  %v65 = vpack.c.b16 %v58, %v57
  %v66 = vpack.c.b16 %v60, %v59
  %v67 = vpack.c.b16 %v62, %v61
  %v68 = vpack.c.b16 %v64, %v63
  %vm73 = vcmask 523264
  %v75 = vsel %vm73, %v29, 0
  %v78 = vsel %vm73, %v30, 0
  %v81 = vsel %vm73, %v31, 0
  %v84 = vsel %vm73, %v32, 0
  %86 = vmatprep.subr.bf16.mxu0 0
  %87 = vmatpush1.bf16.msra.mxu0 %v65
  %88 = vmatprep.subr.bf16.mxu0 0
  %89 = vmatpush1.bf16.msra.mxu0 %v66
  %90 = vmatprep.subr.bf16.mxu0 0
  %91 = vmatpush1.bf16.msra.mxu0 %v67
  %92 = vmatprep.subr.bf16.mxu0 0
  %93 = vmatpush1.bf16.msra.mxu0 %v68
  %94 = vmatprep.subr.bf16.mxu0 0
  %95 = vmatpush1.bf16.msra.mxu0 0
  %96 = vmatprep.subr.bf16.mxu0 0
  %97 = vmatpush1.bf16.msra.mxu0 0
  %98 = vmatprep.subr.bf16.mxu0 0
  %99 = vmatpush1.bf16.msra.mxu0 0
  %100 = vmatprep.subr.bf16.mxu0 0
  %101 = vmatpush1.bf16.msra.mxu0 0
  %102 = vmatprep.subr.bf16.mxu0 0
  %103 = vmatpush1.bf16.msra.mxu0 0
  %104 = vmatprep.subr.bf16.mxu0 0
  %105 = vmatpush1.bf16.msra.mxu0 0
  %106 = vmatprep.subr.bf16.mxu0 0
  %107 = vmatpush1.bf16.msra.mxu0 0
  %108 = vmatprep.subr.bf16.mxu0 0
  %109 = vmatpush1.bf16.msra.mxu0 0
  %110 = vmatprep.subr.bf16.mxu0 0
  %111 = vmatpush1.bf16.msra.mxu0 0
  %112 = vmatprep.subr.bf16.mxu0 0
  %113 = vmatpush1.bf16.msra.mxu0 0
  %114 = vmatprep.subr.bf16.mxu0 0
  %115 = vmatpush1.bf16.msra.mxu0 0
  %116 = vmatprep.subr.bf16.mxu0 0
  %117 = vmatpush1.bf16.msra.mxu0 0
  %118 = vmatprep.mubr.bf16.mxu0 0
  %119 = vmatmul.mubr.bf16.gmra.mrb[0].mxu0 %v75
  %v120 = vpop.f32.mrb[0].mxu0
  %v121 = vadd.f32 0.0, %v120
  %v122 = vpop.f32.mrb[0].mxu0
  %v123 = vpop.f32.mrb[0].mxu0
  %v124 = vadd.f32 0.0, %v123
  %v125 = vpop.f32.mrb[0].mxu0
  %126 = vmatprep.mubr.bf16.mxu0 0
  %127 = vmatmul.mubr.bf16.gmra.mrb[0].mxu0 %v78
  %v128 = vpop.f32.mrb[0].mxu0
  %v129 = vadd.f32 0.0, %v128
  %v130 = vpop.f32.mrb[0].mxu0
  %v131 = vpop.f32.mrb[0].mxu0
  %v132 = vadd.f32 0.0, %v131
  %v133 = vpop.f32.mrb[0].mxu0
  %134 = vmatprep.mubr.bf16.mxu0 0
  %135 = vmatmul.mubr.bf16.gmra.mrb[0].mxu0 %v81
  %v136 = vpop.f32.mrb[0].mxu0
  %v137 = vadd.f32 0.0, %v136
  %v138 = vpop.f32.mrb[0].mxu0
  %v139 = vpop.f32.mrb[0].mxu0
  %v140 = vadd.f32 0.0, %v139
  %v141 = vpop.f32.mrb[0].mxu0
  %142 = vmatprep.mubr.bf16.mxu0 0
  %143 = vmatmul.mubr.bf16.gmra.mrb[0].mxu0 %v84
  %v144 = vpop.f32.mrb[0].mxu0
  %v145 = vadd.f32 0.0, %v144
  %v146 = vpop.f32.mrb[0].mxu0
  %v147 = vpop.f32.mrb[0].mxu0
  %v148 = vadd.f32 0.0, %v147
  %v149 = vpop.f32.mrb[0].mxu0
  %150 = vdwg.mxu0
  %152 = vset.pattern.permute.xlu0 0
  %153 = vperm.xlu0 %152, %v33
  %v154 = vpop.permute.xlu0 %153
  %157 = vset.pattern.permute.xlu0 0
  %158 = vperm.xlu0 %157, %v34
  %v159 = vpop.permute.xlu0 %158
  %162 = vset.pattern.permute.xlu0 0
  %163 = vperm.xlu0 %162, %v35
  %v164 = vpop.permute.xlu0 %163
  %167 = vset.pattern.permute.xlu0 0
  %168 = vperm.xlu0 %167, %v36
  %v169 = vpop.permute.xlu0 %168
  %172 = vset.pattern.permute.xlu0 0
  %173 = vperm.xlu0 %172, %v37
  %v174 = vpop.permute.xlu0 %173
  %177 = vset.pattern.permute.xlu0 0
  %178 = vperm.xlu0 %177, %v38
  %v179 = vpop.permute.xlu0 %178
  %182 = vset.pattern.permute.xlu0 0
  %183 = vperm.xlu0 %182, %v39
  %v184 = vpop.permute.xlu0 %183
  %187 = vset.pattern.permute.xlu0 0
  %188 = vperm.xlu0 %187, %v40
  %v189 = vpop.permute.xlu0 %188
  %v191 = vmul.f32 %v154, %v121
  %v192 = vmul.f32 %v159, %v124
  %v193 = vmul.f32 %v164, %v129
  %v194 = vmul.f32 %v169, %v132
  %v195 = vmul.f32 %v174, %v137
  %v196 = vmul.f32 %v179, %v140
  %v197 = vmul.f32 %v184, %v145
  %v198 = vmul.f32 %v189, %v148
  %v199 = vld [vmem:[%s3] sm:$0xff]
  %v200 = vld [vmem:[%s3 + $0x8] sm:$0xff]
  %v201 = vld [vmem:[%s4] sm:$0x1]
  %v203 = vlaneseq
  %v204 = vshrl.u32 %v203, 7
  %v205 = vsub.s32 0, %v204
  %v206 = vrot.slane %v201, %v205
  %vm208 = vcmask 130048
  %v210 = vsel %vm208, %v191, 0
  %v213 = vsel %vm208, %v192, 0
  %v216 = vsel %vm208, %v193, 0
  %v219 = vsel %vm208, %v194, 0
  %v222 = vsel %vm208, %v195, 0
  %v225 = vsel %vm208, %v196, 0
  %v228 = vsel %vm208, %v197, 0
  %v231 = vsel %vm208, %v198, 0
  %233 = vmatprep.subr.mxu0 0.0
  %234 = vmatpush1.msra.mxu0 %v199
  %235 = vmatprep.subr.mxu0 0.0
  %236 = vmatpush1.msra.mxu0 %v200
  %237 = vmatprep.subr.mxu0 0.0
  %238 = vmatpush1.msra.mxu0 0.0
  %239 = vmatprep.subr.mxu0 0.0
  %240 = vmatpush1.msra.mxu0 0.0
  %241 = vmatprep.subr.mxu0 0.0
  %242 = vmatpush1.msra.mxu0 0.0
  %243 = vmatprep.subr.mxu0 0.0
  %244 = vmatpush1.msra.mxu0 0.0
  %245 = vmatprep.subr.mxu0 0.0
  %246 = vmatpush1.msra.mxu0 0.0
  %247 = vmatprep.subr.mxu0 0.0
  %248 = vmatpush1.msra.mxu0 0.0
  %249 = vmatprep.subr.mxu0 0.0
  %250 = vmatpush1.msra.mxu0 0.0
  %251 = vmatprep.subr.mxu0 0.0
  %252 = vmatpush1.msra.mxu0 0.0
  %253 = vmatprep.subr.mxu0 0.0
  %254 = vmatpush1.msra.mxu0 0.0
  %255 = vmatprep.subr.mxu0 0.0
  %256 = vmatpush1.msra.mxu0 0.0
  %257 = vmatprep.subr.mxu0 0.0
  %258 = vmatpush1.msra.mxu0 0.0
  %259 = vmatprep.subr.mxu0 0.0
  %260 = vmatpush1.msra.mxu0 0.0
  %261 = vmatprep.subr.mxu0 0.0
  %262 = vmatpush1.msra.mxu0 0.0
  %263 = vmatprep.subr.mxu0 0.0
  %264 = vmatpush1.msra.mxu0 0.0
  %265 = vmatprep.subr.mxu0 0.0
  %266 = vmatpush1.msra.mxu0 0.0
  %267 = vmatprep.subr.mxu0 0.0
  %268 = vmatpush1.msra.mxu0 0.0
  %269 = vmatprep.subr.mxu0 0.0
  %270 = vmatpush1.msra.mxu0 0.0
  %271 = vmatprep.subr.mxu0 0.0
  %272 = vmatpush1.msra.mxu0 0.0
  %273 = vmatprep.subr.mxu0 0.0
  %274 = vmatpush1.msra.mxu0 0.0
  %275 = vmatprep.subr.mxu0 0.0
  %276 = vmatpush1.msra.mxu0 0.0
  %277 = vmatprep.subr.mxu0 0.0
  %278 = vmatpush1.msra.mxu0 0.0
  %279 = vmatprep.subr.mxu0 0.0
  %280 = vmatpush1.msra.mxu0 0.0
  %281 = vmatprep.subr.mxu0 0.0
  %282 = vmatpush1.msra.mxu0 0.0
  %283 = vmatprep.subr.mxu0 0.0
  %284 = vmatpush1.msra.mxu0 0.0
  %285 = vmatprep.subr.mxu0 0.0
  %286 = vmatpush1.msra.mxu0 0.0
  %287 = vmatprep.subr.mxu0 0.0
  %288 = vmatpush1.msra.mxu0 0.0
  %289 = vmatprep.subr.mxu0 0.0
  %290 = vmatpush1.msra.mxu0 0.0
  %291 = vmatprep.subr.mxu0 0.0
  %292 = vmatpush1.msra.mxu0 0.0
  %293 = vmatprep.subr.mxu0 0.0
  %294 = vmatpush1.msra.mxu0 0.0
  %295 = vmatprep.subr.mxu0 0.0
  %296 = vmatpush1.msra.mxu0 0.0
  %297 = vmatprep.mubr.f32.mxu0 0.0
  %298 = vmatmul.mubr.f32.gmra.mrb[0].mxu0 %v210
  %v299 = vpop.f32.mrb[0].mxu0
  %v300 = vadd.f32 %v206, %v299
  %v301 = vpop.f32.mrb[0].mxu0
  %302 = vmatprep.mubr.f32.mxu0 0.0
  %303 = vmatmul.mubr.f32.gmra.mrb[0].mxu0 %v213
  %v304 = vpop.f32.mrb[0].mxu0
  %v305 = vadd.f32 %v206, %v304
  %v306 = vpop.f32.mrb[0].mxu0
  %307 = vmatprep.mubr.f32.mxu0 0.0
  %308 = vmatmul.mubr.f32.gmra.mrb[0].mxu0 %v216
  %v309 = vpop.f32.mrb[0].mxu0
  %v310 = vadd.f32 %v206, %v309
  %v311 = vpop.f32.mrb[0].mxu0
  %312 = vmatprep.mubr.f32.mxu0 0.0
  %313 = vmatmul.mubr.f32.gmra.mrb[0].mxu0 %v219
  %v314 = vpop.f32.mrb[0].mxu0
  %v315 = vadd.f32 %v206, %v314
  %v316 = vpop.f32.mrb[0].mxu0
  %317 = vmatprep.mubr.f32.mxu0 0.0
  %318 = vmatmul.mubr.f32.gmra.mrb[0].mxu0 %v222
  %v319 = vpop.f32.mrb[0].mxu0
  %v320 = vadd.f32 %v206, %v319
  %v321 = vpop.f32.mrb[0].mxu0
  %322 = vmatprep.mubr.f32.mxu0 0.0
  %323 = vmatmul.mubr.f32.gmra.mrb[0].mxu0 %v225
  %v324 = vpop.f32.mrb[0].mxu0
  %v325 = vadd.f32 %v206, %v324
  %v326 = vpop.f32.mrb[0].mxu0
  %327 = vmatprep.mubr.f32.mxu0 0.0
  %328 = vmatmul.mubr.f32.gmra.mrb[0].mxu0 %v228
  %v329 = vpop.f32.mrb[0].mxu0
  %v330 = vadd.f32 %v206, %v329
  %v331 = vpop.f32.mrb[0].mxu0
  %332 = vmatprep.mubr.f32.mxu0 0.0
  %333 = vmatmul.mubr.f32.gmra.mrb[0].mxu0 %v231
  %v334 = vpop.f32.mrb[0].mxu0
  %v335 = vadd.f32 %v206, %v334
  %v336 = vpop.f32.mrb[0].mxu0
  %337 = vdwg.mxu0
  %v338 = vmax.f32 %v300, 0.0
  %v339 = vmax.f32 %v305, 0.0
  %v340 = vmax.f32 %v310, 0.0
  %v341 = vmax.f32 %v315, 0.0
  %v342 = vmax.f32 %v320, 0.0
  %v343 = vmax.f32 %v325, 0.0
  %v344 = vmax.f32 %v330, 0.0
  %v345 = vmax.f32 %v335, 0.0
  %v346 = vld [vmem:[%s5] sm:$0xff]
  %v347 = vld [vmem:[%s5 + $0x8] sm:$0xff]
  %v348 = vld [vmem:[%s5 + $0x10] sm:$0xff]
  %v349 = vld [vmem:[%s5 + $0x18] sm:$0xff]
  %vm350 = vcmask 261120
  %v352 = vsel %vm350, %v338, 0
  %v355 = vsel %vm350, %v339, 0
  %v358 = vsel %vm350, %v340, 0
  %v361 = vsel %vm350, %v341, 0
  %v364 = vsel %vm350, %v342, 0
  %v367 = vsel %vm350, %v343, 0
  %v370 = vsel %vm350, %v344, 0
  %v373 = vsel %vm350, %v345, 0
  %375 = vmatprep.subr.mxu0 0.0
  %376 = vmatpush1.msra.mxu0 %v346
  %377 = vmatprep.subr.mxu0 0.0
  %378 = vmatpush1.msra.mxu0 %v347
  %379 = vmatprep.subr.mxu0 0.0
  %380 = vmatpush1.msra.mxu0 %v348
  %381 = vmatprep.subr.mxu0 0.0
  %382 = vmatpush1.msra.mxu0 %v349
  %383 = vmatprep.subr.mxu0 0.0
  %384 = vmatpush1.msra.mxu0 0.0
  %385 = vmatprep.subr.mxu0 0.0
  %386 = vmatpush1.msra.mxu0 0.0
  %387 = vmatprep.subr.mxu0 0.0
  %388 = vmatpush1.msra.mxu0 0.0
  %389 = vmatprep.subr.mxu0 0.0
  %390 = vmatpush1.msra.mxu0 0.0
  %391 = vmatprep.subr.mxu0 0.0
  %392 = vmatpush1.msra.mxu0 0.0
  %393 = vmatprep.subr.mxu0 0.0
  %394 = vmatpush1.msra.mxu0 0.0
  %395 = vmatprep.subr.mxu0 0.0
  %396 = vmatpush1.msra.mxu0 0.0
  %397 = vmatprep.subr.mxu0 0.0
  %398 = vmatpush1.msra.mxu0 0.0
  %399 = vmatprep.subr.mxu0 0.0
  %400 = vmatpush1.msra.mxu0 0.0
  %401 = vmatprep.subr.mxu0 0.0
  %402 = vmatpush1.msra.mxu0 0.0
  %403 = vmatprep.subr.mxu0 0.0
  %404 = vmatpush1.msra.mxu0 0.0
  %405 = vmatprep.subr.mxu0 0.0
  %406 = vmatpush1.msra.mxu0 0.0
  %407 = vmatprep.subr.mxu0 0.0
  %408 = vmatpush1.msra.mxu0 0.0
  %409 = vmatprep.subr.mxu0 0.0
  %410 = vmatpush1.msra.mxu0 0.0
  %411 = vmatprep.subr.mxu0 0.0
  %412 = vmatpush1.msra.mxu0 0.0
  %413 = vmatprep.subr.mxu0 0.0
  %414 = vmatpush1.msra.mxu0 0.0
  %415 = vmatprep.subr.mxu0 0.0
  %416 = vmatpush1.msra.mxu0 0.0
  %417 = vmatprep.subr.mxu0 0.0
  %418 = vmatpush1.msra.mxu0 0.0
  %419 = vmatprep.subr.mxu0 0.0
  %420 = vmatpush1.msra.mxu0 0.0
  %421 = vmatprep.subr.mxu0 0.0
  %422 = vmatpush1.msra.mxu0 0.0
  %423 = vmatprep.subr.mxu0 0.0
  %424 = vmatpush1.msra.mxu0 0.0
  %425 = vmatprep.subr.mxu0 0.0
  %426 = vmatpush1.msra.mxu0 0.0
  %427 = vmatprep.subr.mxu0 0.0
  %428 = vmatpush1.msra.mxu0 0.0
  %429 = vmatprep.subr.mxu0 0.0
  %430 = vmatpush1.msra.mxu0 0.0
  %431 = vmatprep.subr.mxu0 0.0
  %432 = vmatpush1.msra.mxu0 0.0
  %433 = vmatprep.subr.mxu0 0.0
  %434 = vmatpush1.msra.mxu0 0.0
  %435 = vmatprep.subr.mxu0 0.0
  %436 = vmatpush1.msra.mxu0 0.0
  %437 = vmatprep.subr.mxu0 0.0
  %438 = vmatpush1.msra.mxu0 0.0
  %439 = vmatprep.mubr.f32.mxu0 0.0
  %440 = vmatmul.mubr.f32.gmra.mrb[0].mxu0 %v352
  %v441 = vpop.f32.mrb[0].mxu0
  %v442 = vadd.f32 0.0, %v441
  %v443 = vpop.f32.mrb[0].mxu0
  %444 = vmatprep.mubr.f32.mxu0 0.0
  %445 = vmatmul.mubr.f32.gmra.mrb[0].mxu0 %v355
  %v446 = vpop.f32.mrb[0].mxu0
  %v447 = vadd.f32 0.0, %v446
  %v448 = vpop.f32.mrb[0].mxu0
  %449 = vmatprep.mubr.f32.mxu0 0.0
  %450 = vmatmul.mubr.f32.gmra.mrb[0].mxu0 %v358
  %v451 = vpop.f32.mrb[0].mxu0
  %v452 = vadd.f32 0.0, %v451
  %v453 = vpop.f32.mrb[0].mxu0
  %454 = vmatprep.mubr.f32.mxu0 0.0
  %455 = vmatmul.mubr.f32.gmra.mrb[0].mxu0 %v361
  %v456 = vpop.f32.mrb[0].mxu0
  %v457 = vadd.f32 0.0, %v456
  %v458 = vpop.f32.mrb[0].mxu0
  %459 = vmatprep.mubr.f32.mxu0 0.0
  %460 = vmatmul.mubr.f32.gmra.mrb[0].mxu0 %v364
  %v461 = vpop.f32.mrb[0].mxu0
  %v462 = vadd.f32 0.0, %v461
  %v463 = vpop.f32.mrb[0].mxu0
  %464 = vmatprep.mubr.f32.mxu0 0.0
  %465 = vmatmul.mubr.f32.gmra.mrb[0].mxu0 %v367
  %v466 = vpop.f32.mrb[0].mxu0
  %v467 = vadd.f32 0.0, %v466
  %v468 = vpop.f32.mrb[0].mxu0
  %469 = vmatprep.mubr.f32.mxu0 0.0
  %470 = vmatmul.mubr.f32.gmra.mrb[0].mxu0 %v370
  %v471 = vpop.f32.mrb[0].mxu0
  %v472 = vadd.f32 0.0, %v471
  %v473 = vpop.f32.mrb[0].mxu0
  %474 = vmatprep.mubr.f32.mxu0 0.0
  %475 = vmatmul.mubr.f32.gmra.mrb[0].mxu0 %v373
  %v476 = vpop.f32.mrb[0].mxu0
  %v477 = vadd.f32 0.0, %v476
  %v478 = vpop.f32.mrb[0].mxu0
  %479 = vdwg.mxu0
  %v480 = vmul.f32 %v154, %v442
  %v481 = vmul.f32 %v159, %v447
  %v482 = vmul.f32 %v164, %v452
  %v483 = vmul.f32 %v169, %v457
  %v484 = vmul.f32 %v174, %v462
  %v485 = vmul.f32 %v179, %v467
  %v486 = vmul.f32 %v184, %v472
  %v487 = vmul.f32 %v189, %v477
  %v488 = vpack.c.bf16 %v481, %v480
  %v489 = vpack.c.bf16 %v483, %v482
  %v490 = vpack.c.bf16 %v485, %v484
  %v491 = vpack.c.bf16 %v487, %v486
  %492 = vmatprep.subr.bf16.mxu0 0
  %493 = vmatpush1.bf16.msra.mxu0 %v488
  %494 = vmatprep.subr.bf16.mxu0 0
  %495 = vmatpush1.bf16.msra.mxu0 %v489
  %496 = vmatprep.subr.bf16.mxu0 0
  %497 = vmatpush1.bf16.msra.mxu0 %v490
  %498 = vmatprep.subr.bf16.mxu0 0
  %499 = vmatpush1.bf16.msra.mxu0 %v491
  %500 = vmatprep.subr.bf16.mxu0 0
  %501 = vmatpush1.bf16.msra.mxu0 0
  %502 = vmatprep.subr.bf16.mxu0 0
  %503 = vmatpush1.bf16.msra.mxu0 0
  %504 = vmatprep.subr.bf16.mxu0 0
  %505 = vmatpush1.bf16.msra.mxu0 0
  %506 = vmatprep.subr.bf16.mxu0 0
  %507 = vmatpush1.bf16.msra.mxu0 0
  %508 = vmatprep.subr.bf16.mxu0 0
  %509 = vmatpush1.bf16.msra.mxu0 0
  %510 = vmatprep.subr.bf16.mxu0 0
  %511 = vmatpush1.bf16.msra.mxu0 0
  %512 = vmatprep.subr.bf16.mxu0 0
  %513 = vmatpush1.bf16.msra.mxu0 0
  %514 = vmatprep.subr.bf16.mxu0 0
  %515 = vmatpush1.bf16.msra.mxu0 0
  %516 = vmatprep.subr.bf16.mxu0 0
  %517 = vmatpush1.bf16.msra.mxu0 0
  %518 = vmatprep.subr.bf16.mxu0 0
  %519 = vmatpush1.bf16.msra.mxu0 0
  %520 = vmatprep.subr.bf16.mxu0 0
  %521 = vmatpush1.bf16.msra.mxu0 0
  %522 = vmatprep.subr.bf16.mxu0 0
  %523 = vmatpush1.bf16.msra.mxu0 0
  %524 = vmatprep.mubr.bf16.mxu0 0
  %525 = vmatmul.mubr.bf16.gmra.mrb[0].mxu0 %v75
  %v526 = vpop.f32.mrb[0].mxu0
  %v527 = vadd.f32 0.0, %v526
  %v528 = vpop.f32.mrb[0].mxu0
  %v529 = vpop.f32.mrb[0].mxu0
  %v530 = vadd.f32 0.0, %v529
  %v531 = vpop.f32.mrb[0].mxu0
  %532 = vmatprep.mubr.bf16.mxu0 0
  %533 = vmatmul.mubr.bf16.gmra.mrb[0].mxu0 %v78
  %v534 = vpop.f32.mrb[0].mxu0
  %v535 = vadd.f32 0.0, %v534
  %v536 = vpop.f32.mrb[0].mxu0
  %v537 = vpop.f32.mrb[0].mxu0
  %v538 = vadd.f32 0.0, %v537
  %v539 = vpop.f32.mrb[0].mxu0
  %540 = vmatprep.mubr.bf16.mxu0 0
  %541 = vmatmul.mubr.bf16.gmra.mrb[0].mxu0 %v81
  %v542 = vpop.f32.mrb[0].mxu0
  %v543 = vadd.f32 0.0, %v542
  %v544 = vpop.f32.mrb[0].mxu0
  %v545 = vpop.f32.mrb[0].mxu0
  %v546 = vadd.f32 0.0, %v545
  %v547 = vpop.f32.mrb[0].mxu0
  %548 = vmatprep.mubr.bf16.mxu0 0
  %549 = vmatmul.mubr.bf16.gmra.mrb[0].mxu0 %v84
  %v550 = vpop.f32.mrb[0].mxu0
  %v551 = vadd.f32 0.0, %v550
  %v552 = vpop.f32.mrb[0].mxu0
  %v553 = vpop.f32.mrb[0].mxu0
  %v554 = vadd.f32 0.0, %v553
  %v555 = vpop.f32.mrb[0].mxu0
  %556 = vdwg.mxu0
  %v557 = vmul.f32 %v154, %v527
  %v558 = vmul.f32 %v159, %v530
  %v559 = vmul.f32 %v164, %v535
  %v560 = vmul.f32 %v169, %v538
  %v561 = vmul.f32 %v174, %v543
  %v562 = vmul.f32 %v179, %v546
  %v563 = vmul.f32 %v184, %v551
  %v564 = vmul.f32 %v189, %v554
  %v565 = vld [vmem:[%s6] sm:$0x1]
  %v567 = vlaneseq
  %v568 = vshrl.u32 %v567, 7
  %v569 = vsub.s32 0, %v568
  %v570 = vrot.slane %v565, %v569
  %v572 = vadd.f32 %v557, %v570
  %v573 = vadd.f32 %v558, %v570
  %v574 = vadd.f32 %v559, %v570
  %v575 = vadd.f32 %v560, %v570
  %v576 = vadd.f32 %v561, %v570
  %v577 = vadd.f32 %v562, %v570
  %v578 = vadd.f32 %v563, %v570
  %v579 = vadd.f32 %v564, %v570
  %v580 = vlaneseq
  %v581 = vand.u32 %v580, 127
  %vm582 = vcmp.lt.s32.totalorder %v581, 8
  %v583 = vsel %vm582, %v572, -1e+30
  %v584 = vsel %vm582, %v573, -1e+30
  %v585 = vsel %vm582, %v574, -1e+30
  %v586 = vsel %vm582, %v575, -1e+30
  %v587 = vsel %vm582, %v576, -1e+30
  %v588 = vsel %vm582, %v577, -1e+30
  %v589 = vsel %vm582, %v578, -1e+30
  %v590 = vsel %vm582, %v579, -1e+30
  %591 = vmax.xlane.f32.xlu0 %v583
  %v592 = vpop.xlane.xlu0 %591
  %593 = vmax.xlane.f32.xlu0 %v584
  %v594 = vpop.xlane.xlu0 %593
  %595 = vmax.xlane.f32.xlu0 %v585
  %v596 = vpop.xlane.xlu0 %595
  %597 = vmax.xlane.f32.xlu0 %v586
  %v598 = vpop.xlane.xlu0 %597
  %599 = vmax.xlane.f32.xlu0 %v587
  %v600 = vpop.xlane.xlu0 %599
  %601 = vmax.xlane.f32.xlu0 %v588
  %v602 = vpop.xlane.xlu0 %601
  %603 = vmax.xlane.f32.xlu0 %v589
  %v604 = vpop.xlane.xlu0 %603
  %605 = vmax.xlane.f32.xlu0 %v590
  %v606 = vpop.xlane.xlu0 %605
  %v607 = vsub.f32 %v583, %v592
  %v608 = vsub.f32 %v584, %v594
  %v609 = vsub.f32 %v585, %v596
  %v610 = vsub.f32 %v586, %v598
  %v611 = vsub.f32 %v587, %v600
  %v612 = vsub.f32 %v588, %v602
  %v613 = vsub.f32 %v589, %v604
  %v614 = vsub.f32 %v590, %v606
  %v615 = vmul.f32 %v607, 1.442695
  %v616 = vpow.pop %v615
  %v617 = vmul.f32 %v608, 1.442695
  %v618 = vpow.pop %v617
  %v619 = vmul.f32 %v609, 1.442695
  %v620 = vpow.pop %v619
  %v621 = vmul.f32 %v610, 1.442695
  %v622 = vpow.pop %v621
  %v623 = vmul.f32 %v611, 1.442695
  %v624 = vpow.pop %v623
  %v625 = vmul.f32 %v612, 1.442695
  %v626 = vpow.pop %v625
  %v627 = vmul.f32 %v613, 1.442695
  %v628 = vpow.pop %v627
  %v629 = vmul.f32 %v614, 1.442695
  %v630 = vpow.pop %v629
  %631 = vadd.xlane.f32.xlu0 %v616
  %v632 = vpop.xlane.xlu0 %631
  %633 = vadd.xlane.f32.xlu0 %v618
  %v634 = vpop.xlane.xlu0 %633
  %635 = vadd.xlane.f32.xlu0 %v620
  %v636 = vpop.xlane.xlu0 %635
  %637 = vadd.xlane.f32.xlu0 %v622
  %v638 = vpop.xlane.xlu0 %637
  %639 = vadd.xlane.f32.xlu0 %v624
  %v640 = vpop.xlane.xlu0 %639
  %641 = vadd.xlane.f32.xlu0 %v626
  %v642 = vpop.xlane.xlu0 %641
  %643 = vadd.xlane.f32.xlu0 %v628
  %v644 = vpop.xlane.xlu0 %643
  %645 = vadd.xlane.f32.xlu0 %v630
  %v646 = vpop.xlane.xlu0 %645
  %v647 = vlog2.pop %v632
  %v648 = vmul.f32 %v647, 0.6931472
  %v649 = vlog2.pop %v634
  %v650 = vmul.f32 %v649, 0.6931472
  %v651 = vlog2.pop %v636
  %v652 = vmul.f32 %v651, 0.6931472
  %v653 = vlog2.pop %v638
  %v654 = vmul.f32 %v653, 0.6931472
  %v655 = vlog2.pop %v640
  %v656 = vmul.f32 %v655, 0.6931472
  %v657 = vlog2.pop %v642
  %v658 = vmul.f32 %v657, 0.6931472
  %v659 = vlog2.pop %v644
  %v660 = vmul.f32 %v659, 0.6931472
  %v661 = vlog2.pop %v646
  %v662 = vmul.f32 %v661, 0.6931472
  %v663 = vsub.f32 %v607, %v648
  %v664 = vsub.f32 %v608, %v650
  %v665 = vsub.f32 %v609, %v652
  %v666 = vsub.f32 %v610, %v654
  %v667 = vsub.f32 %v611, %v656
  %v668 = vsub.f32 %v612, %v658
  %v669 = vsub.f32 %v613, %v660
  %v670 = vsub.f32 %v614, %v662
  %671 = vst [vmem:[%s7] sm:$0xff] %v663
  %672 = vst [vmem:[%s7 + $0x8] sm:$0xff] %v664
  %673 = vst [vmem:[%s7 + $0x10] sm:$0xff] %v665
  %674 = vst [vmem:[%s7 + $0x18] sm:$0xff] %v666
  %675 = vst [vmem:[%s7 + $0x20] sm:$0xff] %v667
  %676 = vst [vmem:[%s7 + $0x28] sm:$0xff] %v668
  %677 = vst [vmem:[%s7 + $0x30] sm:$0xff] %v669
  %678 = vst [vmem:[%s7 + $0x38] sm:$0xff] %v670
  // Predicated region
  $region30: #{geometric_gcn.1} parent=0 // pred_check
    _
  $region31: #{geometric_gcn.1} parent=0 // pred_check_branch
    %680 = sbr.rel (0) target = $region33
  $region32: #{geometric_gcn.1} parent=0 // pred_region
    _
  $region33: #{geometric_gcn.1} parent=0 // pred_fallthru
    _
  // Predicated region
  $region34: #{geometric_gcn.1} parent=0 // pred_check
    _
  $region35: #{geometric_gcn.1} parent=0 // pred_check_branch
    %682 = sbr.rel (0) target = $region37
  $region36: #{geometric_gcn.1} parent=0 // pred_region
    _
  $region37: #{geometric_gcn.1} parent=0 // pred_fallthru
    _

</llo_original>
